<compile_context>
chip_gen: v7x
topology: tpu7x:2x2x1
jax: 0.10.0
libtpu: 0.0.40
codegen_flags: <defaults>
</compile_context>

<pallas_src>
import jax
import jax.numpy as jnp
from jax.experimental import pallas as pl
from jax.experimental.pallas import tpu as pltpu


_LANE = 128      # lane width: keep the flattened feature dim a multiple of this
_SUBLANE = 8     # f32 sublane granularity for batch tiles
# Conservative per-tile VMEM budget (Pallas double-buffers), sized to stay well
# under v7x's 32 MiB default scoped / 64 MiB physical VMEM (and trivially under
# v5e/v6e's 128 MiB).
_TILE_VMEM_BUDGET_BYTES = 4 * 1024 * 1024


def _broadcast_const_kernel(const_ref, o_ref):
    # const_ref: (1, F) lane-dense row holding the learned constant (VMEM).
    # o_ref:     (Tb, F) output block (whole (B, F) slab on the gridless path).
    # One sublane broadcast of a single row, then full-lane-width stores; the
    # store slot is the only unit doing real work.
    # TODO(synk): for very large Tb, a stride-0 sublane-broadcast read
    # (const_ref[pl.ds(0, Tb, stride=0), :]) would skip the vreg broadcast
    # intermediate entirely; negligible at the sizes used here.
    o_ref[...] = jnp.broadcast_to(const_ref[...], o_ref.shape)


def input_layer_forward(w, const, inp=None,
                        tile_vmem_budget_bytes=_TILE_VMEM_BUDGET_BYTES):
    """Pallas equivalent of InputLayer.forward.

    Args:
      w:     (B, w_dim) latent codes -- only the batch size is used.
      const: (1, C, H, W) learned constant.
      inp:   optional override input; if given, it is returned as-is.

    Returns:
      (B, C, H, W) array (== const repeated over batch when inp is None).
    """
    if inp is not None:
        # Pass-through branch: pure glue, nothing to put in a kernel.
        return inp

    B = w.shape[0]
    _, C, H, W = const.shape
    F = C * H * W
    dtype = const.dtype
    itemsize = jnp.dtype(dtype).itemsize

    # Lane-density guard: pad the flattened feature dim to a multiple of 128 so
    # every output store is an unmasked full-width vst. Free (no-op pad) for the
    # default config C=8, H=W=4 -> F=128 exactly.
    F_pad = ((F + _LANE - 1) // _LANE) * _LANE
    const_flat = const.reshape(1, F)  # free metadata reshape
    if F_pad != F:
        const_flat = jnp.pad(const_flat, ((0, 0), (0, F_pad - F)))

    cost = pl.CostEstimate(
        flops=0,
        transcendentals=0,
        bytes_accessed=(1 + B) * F_pad * itemsize,
    )

    out_bytes = B * F_pad * itemsize
    if out_bytes <= tile_vmem_budget_bytes:
        # Default path: no grid, whole-array VMEM blocks, one DMA each way,
        # zero per-step pipeline overhead. This is the launch-overhead floor.
        out_flat = pl.pallas_call(
            _broadcast_const_kernel,
            out_shape=jax.ShapeDtypeStruct((B, F_pad), dtype),
            in_specs=[pl.BlockSpec(memory_space=pltpu.MemorySpace.VMEM)],
            out_specs=pl.BlockSpec(memory_space=pltpu.MemorySpace.VMEM),
            cost_estimate=cost,
        )(const_flat)
    else:
        # Scaled-up path (large batch / channels): tile over batch so each
        # (Tb, F_pad) block (x2 double buffering) fits comfortably in VMEM on
        # v7x, keep stores lane-dense, and shard the batch grid across cores.
        tb = (tile_vmem_budget_bytes // (F_pad * itemsize)) // _SUBLANE * _SUBLANE
        tb = max(_SUBLANE, tb)
        tb = min(tb, B)
        out_flat = pl.pallas_call(
            _broadcast_const_kernel,
            out_shape=jax.ShapeDtypeStruct((B, F_pad), dtype),
            grid=(pl.cdiv(B, tb),),
            in_specs=[pl.BlockSpec((1, F_pad), lambda i: (0, 0))],   # batch-invariant
            out_specs=pl.BlockSpec((tb, F_pad), lambda i: (i, 0)),
            cost_estimate=cost,
            compiler_params=pltpu.CompilerParams(
                dimension_semantics=("parallel",)),
        )(const_flat)

    if F_pad != F:
        out_flat = out_flat[:, :F]
    return out_flat.reshape(B, C, H, W)


if __name__ == "__main__":
    # Module config consistent with InputLayer(init_res, channels).
    init_res = 4
    channels = 8
    batch = 2
    w_dim = 32

    key = jax.random.PRNGKey(0)
    k_const, k_w, k_inp, k_const2 = jax.random.split(key, 4)

    # Deterministic "parameter" init (stand-in for torch.randn const).
    const = jax.random.normal(
        k_const, (1, channels, init_res, init_res), dtype=jnp.float32)
    w = jax.random.normal(k_w, (batch, w_dim), dtype=jnp.float32)

    # Branch 1: input is None -> repeat const over batch.
    out = jax.block_until_ready(input_layer_forward(w, const))
    ref = jnp.broadcast_to(const, (batch, channels, init_res, init_res))
    assert out.shape == ref.shape
    assert out.dtype == const.dtype
    assert jnp.array_equal(out, ref), "mismatch vs broadcast reference"

    # Branch 2: explicit input -> pass-through.
    explicit = jax.random.normal(
        k_inp, (batch, channels, init_res, init_res), dtype=jnp.float32)
    out2 = jax.block_until_ready(input_layer_forward(w, const, inp=explicit))
    assert jnp.array_equal(out2, explicit)

    # Lane-padding guard path: F = C*H*W not a multiple of 128 (C=3, res=5 -> F=75).
    const_odd = jax.random.normal(k_const2, (1, 3, 5, 5), dtype=jnp.float32)
    out3 = jax.block_until_ready(input_layer_forward(w, const_odd))
    assert jnp.array_equal(out3, jnp.broadcast_to(const_odd, (batch, 3, 5, 5)))

    # Batch-tiled (gridded, megacore-parallel) path, forced with a tiny budget.
    w_big = jax.random.normal(k_w, (16, w_dim), dtype=jnp.float32)
    out4 = jax.block_until_ready(
        input_layer_forward(w_big, const, tile_vmem_budget_bytes=256))
    assert jnp.array_equal(
        out4, jnp.broadcast_to(const, (16, channels, init_res, init_res)))

    print("KERNEL_OK")
</pallas_src>

<mosaic_0001>
module attributes {stable_mosaic.version = 11 : i64} {
  func.func @_broadcast_const_kernel(%arg0: memref<1x128xf32, #tpu.memory_space<vmem>>, %arg1: memref<2x128xf32, #tpu.memory_space<vmem>>) attributes {dimension_semantics = [], scalar_prefetch = 0 : i64, scratch_operands = 0 : i64, tpu.core_type = #tpu.core_type<tc>} {
    %c0 = arith.constant 0 : index
    %c0_0 = arith.constant 0 : index
    %0 = vector.load %arg0[%c0, %c0_0] : memref<1x128xf32, #tpu.memory_space<vmem>>, vector<1x128xf32>
    %1 = vector.shape_cast %0 : vector<1x128xf32> to vector<1x128xf32>
    %2 = vector.broadcast %1 : vector<1x128xf32> to vector<2x128xf32>
    %c0_1 = arith.constant 0 : index
    %c0_2 = arith.constant 0 : index
    %3 = vector.load %arg1[%c0_1, %c0_2] : memref<2x128xf32, #tpu.memory_space<vmem>>, vector<2x128xf32>
    tpu.vector_store %arg1[%c0_1, %c0_2], %2 {strides = array<i32>} : memref<2x128xf32, #tpu.memory_space<vmem>>, vector<2x128xf32>,
    return
  }
}

</mosaic_0001>

<llo_original>
// kernel: tpu_custom_call.1
$region0: #{tpu_custom_call.1}
  #allocation0 [shape = 'u32[]', space=smem, size = 0x4, offset = 0x4, fixed_abs, tag = 'smem constant byte address 0x4 - core index']
  #allocation1 [shape = 'u32[144,128]{1,0:T(1,128)}', space=vmem, size = 0x12000, scoped, tag = 'internal scratch']
  %s0 = inlined_call_operand.hbm [shape: f32[1,128], index: 0, kind: input, shape index: {}]
  %s1 = inlined_call_operand.hbm [shape: f32[2,128], index: 1, kind: output, shape index: {}]
  %s2 = sld [smem:[#allocation0]]
  $region18: #{tpu_custom_call.1} parent=0
    _
  %s4 = ssub.s32 1, %s2
  %s5 = scalar_select 0, %s4, %s2
  $region1: #{tpu_custom_call.1} parent=0
    #allocation2 [shape = 'u8[512]{0}', space=vmem, size = 0x400, scoped, tag = 'input window, operand 0, single buffered']
    #allocation3 [shape = 's32[1]{0}', space=sflag, size = 0x4, scoped, tag = 'scoped memory for tpu_custom_call.1']
    #allocation4 [shape = 's32[1]{0}', space=sflag, size = 0x4, scoped, tag = 'scoped memory for tpu_custom_call.1']
    #allocation5 [shape = 'u8[1024]{0}', space=vmem, size = 0x400, scoped, tag = 'output window, operand 0, single buffered']
    %6 = vsyncpa [#allocation3], 0
    %7 = vsyncpa [#allocation4], 0
    // Predicated region
    $region2: #{tpu_custom_call.1} parent=1 // pred_check
      _
    $region3: #{tpu_custom_call.1} parent=1 // pred_check_branch
      %9 = sbr.rel (0) target = $region5
    $region4: #{tpu_custom_call.1} parent=1 // pred_region
      %s11 = ssub.s32 16, 16
      %12 = vsyncadd [#allocation3], %s11
      %s14 = sshll.u32 [#allocation2], 4
      %s15 = int_to_ptr.vmem [resolvable:$true] %s14
      %17 = dma.hbm_to_vmem [thread:$0]  %s0, 16, %s15, [#allocation3]
    $region5: #{tpu_custom_call.1} parent=1 // pred_fallthru
      _
    // Predicated region
    $region6: #{tpu_custom_call.1} parent=1 // pred_check
      _
    $region7: #{tpu_custom_call.1} parent=1 // pred_check_branch
      %19 = sbr.rel (0) target = $region9
    $region8: #{tpu_custom_call.1} parent=1 // pred_region
      %20 = dma.done [#allocation3], 16
    $region9: #{tpu_custom_call.1} parent=1 // pred_fallthru
      _
    %v21 = vld [vmem:[#allocation2] sm:$0x1]
    %v23 = vlaneseq
    %v24 = vshrl.u32 %v23, 7
    %v25 = vsub.s32 0, %v24
    %v26 = vrot.slane %v21, %v25
    %28 = vst [vmem:[#allocation5] sm:$0x3] %v26
    // Predicated region
    $region10: #{tpu_custom_call.1} parent=1 // pred_check
      _
    $region11: #{tpu_custom_call.1} parent=1 // pred_check_branch
      %30 = sbr.rel (0) target = $region13
    $region12: #{tpu_custom_call.1} parent=1 // pred_region
      %s32 = ssub.s32 32, 32
      %33 = vsyncadd [#allocation4], %s32
      %s35 = sshll.u32 [#allocation5], 4
      %s36 = int_to_ptr.vmem [resolvable:$true] %s35
      %38 = dma.vmem_to_hbm [thread:$0]  %s36, 32, %s1, [#allocation4]
    $region13: #{tpu_custom_call.1} parent=1 // pred_fallthru
      _
    // Predicated region
    $region14: #{tpu_custom_call.1} parent=1 // pred_check
      _
    $region15: #{tpu_custom_call.1} parent=1 // pred_check_branch
      %40 = sbr.rel (0) target = $region17
    $region16: #{tpu_custom_call.1} parent=1 // pred_region
      %41 = dma.done [#allocation4], 32
    $region17: #{tpu_custom_call.1} parent=1 // pred_fallthru
      _
    %42 = vsyncpa [#allocation3], 1
    %43 = vsyncpa [#allocation4], 1

</llo_original>
